<compile_context>
chip_gen: v7x
topology: tpu7x:2x2x1
jax: 0.10.0
libtpu: 0.0.40
codegen_flags: <defaults>
</compile_context>

<pallas_src>
import jax
import jax.numpy as jnp
from jax.experimental import pallas as pl
from jax.experimental.pallas import tpu as pltpu


def rnn_kernel(xproj_ref, h0_ref, whh_ref, hs_ref):
    """Serial recurrence over one batch tile.

    xproj_ref : (S, TB, H)  time-major, pre-projected input (x @ W_ih^T + bias)
    h0_ref    : (TB, H)     initial hidden state for this batch tile
    whh_ref   : (H, H)      W_hh^T (the only resident weight)
    hs_ref    : (S, TB, H)  time-major hidden state at every timestep (output)
    """
    S = xproj_ref.shape[0]

    w_hh_t = whh_ref[...]          # (H, H) load once, reuse every step
    h = h0_ref[...]                # (TB, H) hidden-state carry

    # Static unroll over time (the recurrence is inherently sequential).
    for t in range(S):
        h = jnp.tanh(
            jnp.dot(h, w_hh_t, preferred_element_type=jnp.float32) + xproj_ref[t]
        )
        hs_ref[t] = h              # one contiguous (TB, H) lane-dense store


def rnn_forward(x, hidden, params):
    """x: (B, S, I), hidden: (1, B, H).  Returns (y, hidden_out):
    y (B, S, 1), hidden_out (1, B, H)."""
    B, S, I = x.shape
    H = params["w_hh"].shape[0]
    TB = 8                                  # batch tile = one f32 sublane group
    B_pad = ((B + TB - 1) // TB) * TB

    x32 = x.astype(jnp.float32)
    h0 = hidden[0].astype(jnp.float32)      # (B, H)
    if B_pad != B:
        # NOTE: padded batch rows compute tanh(bias)-driven values in the kernel;
        # rows are independent and are sliced off below — never read hs beyond B.
        x32 = jnp.pad(x32, ((0, B_pad - B), (0, 0), (0, 0)))
        h0 = jnp.pad(h0, ((0, B_pad - B), (0, 0)))

    w_ih = params["w_ih"].astype(jnp.float32)            # (H, I)
    w_hh_t = params["w_hh"].astype(jnp.float32).T        # (H, H)
    bias = (params["b_ih"] + params["b_hh"]).astype(jnp.float32)  # (H,)

    # Input projection + fused bias: one parallel matmul, produced TIME-MAJOR
    # (S, B_pad, H) so each per-step kernel read is a single contiguous tile.
    xproj = jnp.einsum("bsi,hi->sbh", x32, w_ih) + bias   # (S, B_pad, H)

    hs = pl.pallas_call(
        rnn_kernel,
        out_shape=jax.ShapeDtypeStruct((S, B_pad, H), jnp.float32),
        grid=(B_pad // TB,),
        in_specs=[
            pl.BlockSpec((S, TB, H), lambda i: (0, i, 0)),   # xproj (batch tile)
            pl.BlockSpec((TB, H), lambda i: (i, 0)),         # h0    (batch tile)
            pl.BlockSpec((H, H), lambda i: (0, 0)),          # W_hh^T (resident)
        ],
        out_specs=pl.BlockSpec((S, TB, H), lambda i: (0, i, 0)),
        compiler_params=pltpu.CompilerParams(
            dimension_semantics=("parallel",),   # batch tiles independent (v7x megacore)
        ),
    )(xproj, h0, w_hh_t)

    # Back to batch-first, strip padding, then the Linear output head as one XLA matmul.
    outputs = jnp.transpose(hs[:, :B, :], (1, 0, 2))          # (B, S, H)
    y = outputs @ params["w_out"].T + params["b_out"]         # (B, S, 1)
    h_out = hs[-1, :B, :][None, :, :]                         # (1, B, H)
    return y, h_out


def rnn_reference(x, hidden, params):
    """Plain-JAX reference of nn.RNN(tanh, batch_first) + Linear."""
    h = hidden[0]
    wih_t = params["w_ih"].T
    whh_t = params["w_hh"].T
    bias = params["b_ih"] + params["b_hh"]

    def step(h, x_t):
        h_new = jnp.tanh(x_t @ wih_t + h @ whh_t + bias)
        return h_new, h_new

    h_last, hs = jax.lax.scan(step, h, jnp.transpose(x, (1, 0, 2)))
    outputs = jnp.transpose(hs, (1, 0, 2))                    # (B, S, H)
    y = outputs @ params["w_out"].T + params["b_out"]         # (B, S, 1)
    return y, h_last[None, :, :]


def init_params(key, input_size, hidden_size, output_dim=1):
    k = jax.random.split(key, 6)
    bound = 1.0 / jnp.sqrt(hidden_size)
    u = lambda kk, shape: jax.random.uniform(kk, shape, jnp.float32, -bound, bound)
    return {
        "w_ih": u(k[0], (hidden_size, input_size)),
        "w_hh": u(k[1], (hidden_size, hidden_size)),
        "b_ih": u(k[2], (hidden_size,)),
        "b_hh": u(k[3], (hidden_size,)),
        "w_out": u(k[4], (output_dim, hidden_size)),
        "b_out": u(k[5], (output_dim,)),
    }


if __name__ == "__main__":
    BATCH, SEQ, INPUT_SIZE, HIDDEN_SIZE = 2, 8, 4, 32

    key = jax.random.PRNGKey(0)
    k_params, k_x = jax.random.split(key)

    params = init_params(k_params, INPUT_SIZE, HIDDEN_SIZE)
    x = jax.random.normal(k_x, (BATCH, SEQ, INPUT_SIZE), dtype=jnp.float32)
    hidden = jnp.zeros((1, BATCH, HIDDEN_SIZE), dtype=jnp.float32)  # init_hidden

    y, h_out = jax.jit(rnn_forward)(x, hidden, params)
    y = jax.block_until_ready(y)
    h_out = jax.block_until_ready(h_out)

    y_ref, h_ref = rnn_reference(x, hidden, params)
    assert y.shape == (BATCH, SEQ, 1) and h_out.shape == (1, BATCH, HIDDEN_SIZE)
    assert jnp.allclose(y, y_ref, atol=1e-5, rtol=1e-5)
    assert jnp.allclose(h_out, h_ref, atol=1e-5, rtol=1e-5)

    print("KERNEL_OK")
</pallas_src>

<mosaic_0001>
module attributes {stable_mosaic.version = 11 : i64} {
  func.func @rnn_kernel(%arg0: i32, %arg1: memref<8x8x32xf32, #tpu.memory_space<vmem>>, %arg2: memref<8x32xf32, #tpu.memory_space<vmem>>, %arg3: memref<32x32xf32, #tpu.memory_space<vmem>>, %arg4: memref<8x8x32xf32, #tpu.memory_space<vmem>>) attributes {dimension_semantics = [#tpu.dimension_semantics<parallel>], iteration_bounds = array<i64: 1>, scalar_prefetch = 0 : i64, scratch_operands = 0 : i64, tpu.core_type = #tpu.core_type<tc>, window_params = [{transform_indices = @transform_0, window_bounds = array<i64: 8, 8, 32>}, {transform_indices = @transform_1, window_bounds = array<i64: 8, 32>}, {pipeline_mode = #tpu.pipeline_mode<synchronous>, transform_indices = @transform_2, window_bounds = array<i64: 32, 32>}, {transform_indices = @transform_3, window_bounds = array<i64: 8, 8, 32>}]} {
    %c0 = arith.constant 0 : index
    %c0_0 = arith.constant 0 : index
    %0 = vector.load %arg3[%c0, %c0_0] : memref<32x32xf32, #tpu.memory_space<vmem>>, vector<32x32xf32>
    %c0_1 = arith.constant 0 : index
    %c0_2 = arith.constant 0 : index
    %1 = vector.load %arg2[%c0_1, %c0_2] : memref<8x32xf32, #tpu.memory_space<vmem>>, vector<8x32xf32>
    %cst = arith.constant dense<0.000000e+00> : vector<8x32xf32>
    %2 = tpu.matmul %1, %0, %cst {dimension_numbers = #tpu.dot_dimension_numbers<[1], [0], [0], [1], [0, 0, 1, 1], [], []>} : vector<8x32xf32>, vector<32x32xf32>, vector<8x32xf32> -> vector<8x32xf32>
    %c0_3 = arith.constant 0 : index
    %c0_4 = arith.constant 0 : index
    %c0_5 = arith.constant 0 : index
    %3 = vector.load %arg1[%c0_3, %c0_4, %c0_5] : memref<8x8x32xf32, #tpu.memory_space<vmem>>, vector<1x8x32xf32>
    %4 = vector.shape_cast %3 : vector<1x8x32xf32> to vector<8x32xf32>
    %5 = arith.addf %2, %4 : vector<8x32xf32>
    %6 = math.tanh %5 : vector<8x32xf32>
    %c0_6 = arith.constant 0 : index
    %c0_7 = arith.constant 0 : index
    %c0_8 = arith.constant 0 : index
    %7 = vector.load %arg4[%c0_6, %c0_7, %c0_8] : memref<8x8x32xf32, #tpu.memory_space<vmem>>, vector<1x8x32xf32>
    %8 = vector.shape_cast %7 : vector<1x8x32xf32> to vector<8x32xf32>
    %9 = vector.shape_cast %6 : vector<8x32xf32> to vector<1x8x32xf32>
    tpu.vector_store %arg4[%c0_6, %c0_7, %c0_8], %9 {strides = array<i32>} : memref<8x8x32xf32, #tpu.memory_space<vmem>>, vector<1x8x32xf32>,
    %cst_9 = arith.constant dense<0.000000e+00> : vector<8x32xf32>
    %10 = tpu.matmul %6, %0, %cst_9 {dimension_numbers = #tpu.dot_dimension_numbers<[1], [0], [0], [1], [0, 0, 1, 1], [], []>} : vector<8x32xf32>, vector<32x32xf32>, vector<8x32xf32> -> vector<8x32xf32>
    %c1 = arith.constant 1 : index
    %c0_10 = arith.constant 0 : index
    %c0_11 = arith.constant 0 : index
    %11 = vector.load %arg1[%c1, %c0_10, %c0_11] : memref<8x8x32xf32, #tpu.memory_space<vmem>>, vector<1x8x32xf32>
    %12 = vector.shape_cast %11 : vector<1x8x32xf32> to vector<8x32xf32>
    %13 = arith.addf %10, %12 : vector<8x32xf32>
    %14 = math.tanh %13 : vector<8x32xf32>
    %c1_12 = arith.constant 1 : index
    %c0_13 = arith.constant 0 : index
    %c0_14 = arith.constant 0 : index
    %15 = vector.load %arg4[%c1_12, %c0_13, %c0_14] : memref<8x8x32xf32, #tpu.memory_space<vmem>>, vector<1x8x32xf32>
    %16 = vector.shape_cast %15 : vector<1x8x32xf32> to vector<8x32xf32>
    %17 = vector.shape_cast %14 : vector<8x32xf32> to vector<1x8x32xf32>
    tpu.vector_store %arg4[%c1_12, %c0_13, %c0_14], %17 {strides = array<i32>} : memref<8x8x32xf32, #tpu.memory_space<vmem>>, vector<1x8x32xf32>,
    %cst_15 = arith.constant dense<0.000000e+00> : vector<8x32xf32>
    %18 = tpu.matmul %14, %0, %cst_15 {dimension_numbers = #tpu.dot_dimension_numbers<[1], [0], [0], [1], [0, 0, 1, 1], [], []>} : vector<8x32xf32>, vector<32x32xf32>, vector<8x32xf32> -> vector<8x32xf32>
    %c2 = arith.constant 2 : index
    %c0_16 = arith.constant 0 : index
    %c0_17 = arith.constant 0 : index
    %19 = vector.load %arg1[%c2, %c0_16, %c0_17] : memref<8x8x32xf32, #tpu.memory_space<vmem>>, vector<1x8x32xf32>
    %20 = vector.shape_cast %19 : vector<1x8x32xf32> to vector<8x32xf32>
    %21 = arith.addf %18, %20 : vector<8x32xf32>
    %22 = math.tanh %21 : vector<8x32xf32>
    %c2_18 = arith.constant 2 : index
    %c0_19 = arith.constant 0 : index
    %c0_20 = arith.constant 0 : index
    %23 = vector.load %arg4[%c2_18, %c0_19, %c0_20] : memref<8x8x32xf32, #tpu.memory_space<vmem>>, vector<1x8x32xf32>
    %24 = vector.shape_cast %23 : vector<1x8x32xf32> to vector<8x32xf32>
    %25 = vector.shape_cast %22 : vector<8x32xf32> to vector<1x8x32xf32>
    tpu.vector_store %arg4[%c2_18, %c0_19, %c0_20], %25 {strides = array<i32>} : memref<8x8x32xf32, #tpu.memory_space<vmem>>, vector<1x8x32xf32>,
    %cst_21 = arith.constant dense<0.000000e+00> : vector<8x32xf32>
    %26 = tpu.matmul %22, %0, %cst_21 {dimension_numbers = #tpu.dot_dimension_numbers<[1], [0], [0], [1], [0, 0, 1, 1], [], []>} : vector<8x32xf32>, vector<32x32xf32>, vector<8x32xf32> -> vector<8x32xf32>
    %c3 = arith.constant 3 : index
    %c0_22 = arith.constant 0 : index
    %c0_23 = arith.constant 0 : index
    %27 = vector.load %arg1[%c3, %c0_22, %c0_23] : memref<8x8x32xf32, #tpu.memory_space<vmem>>, vector<1x8x32xf32>
    %28 = vector.shape_cast %27 : vector<1x8x32xf32> to vector<8x32xf32>
    %29 = arith.addf %26, %28 : vector<8x32xf32>
    %30 = math.tanh %29 : vector<8x32xf32>
    %c3_24 = arith.constant 3 : index
    %c0_25 = arith.constant 0 : index
    %c0_26 = arith.constant 0 : index
    %31 = vector.load %arg4[%c3_24, %c0_25, %c0_26] : memref<8x8x32xf32, #tpu.memory_space<vmem>>, vector<1x8x32xf32>
    %32 = vector.shape_cast %31 : vector<1x8x32xf32> to vector<8x32xf32>
    %33 = vector.shape_cast %30 : vector<8x32xf32> to vector<1x8x32xf32>
    tpu.vector_store %arg4[%c3_24, %c0_25, %c0_26], %33 {strides = array<i32>} : memref<8x8x32xf32, #tpu.memory_space<vmem>>, vector<1x8x32xf32>,
    %cst_27 = arith.constant dense<0.000000e+00> : vector<8x32xf32>
    %34 = tpu.matmul %30, %0, %cst_27 {dimension_numbers = #tpu.dot_dimension_numbers<[1], [0], [0], [1], [0, 0, 1, 1], [], []>} : vector<8x32xf32>, vector<32x32xf32>, vector<8x32xf32> -> vector<8x32xf32>
    %c4 = arith.constant 4 : index
    %c0_28 = arith.constant 0 : index
    %c0_29 = arith.constant 0 : index
    %35 = vector.load %arg1[%c4, %c0_28, %c0_29] : memref<8x8x32xf32, #tpu.memory_space<vmem>>, vector<1x8x32xf32>
    %36 = vector.shape_cast %35 : vector<1x8x32xf32> to vector<8x32xf32>
    %37 = arith.addf %34, %36 : vector<8x32xf32>
    %38 = math.tanh %37 : vector<8x32xf32>
    %c4_30 = arith.constant 4 : index
    %c0_31 = arith.constant 0 : index
    %c0_32 = arith.constant 0 : index
    %39 = vector.load %arg4[%c4_30, %c0_31, %c0_32] : memref<8x8x32xf32, #tpu.memory_space<vmem>>, vector<1x8x32xf32>
    %40 = vector.shape_cast %39 : vector<1x8x32xf32> to vector<8x32xf32>
    %41 = vector.shape_cast %38 : vector<8x32xf32> to vector<1x8x32xf32>
    tpu.vector_store %arg4[%c4_30, %c0_31, %c0_32], %41 {strides = array<i32>} : memref<8x8x32xf32, #tpu.memory_space<vmem>>, vector<1x8x32xf32>,
    %cst_33 = arith.constant dense<0.000000e+00> : vector<8x32xf32>
    %42 = tpu.matmul %38, %0, %cst_33 {dimension_numbers = #tpu.dot_dimension_numbers<[1], [0], [0], [1], [0, 0, 1, 1], [], []>} : vector<8x32xf32>, vector<32x32xf32>, vector<8x32xf32> -> vector<8x32xf32>
    %c5 = arith.constant 5 : index
    %c0_34 = arith.constant 0 : index
    %c0_35 = arith.constant 0 : index
    %43 = vector.load %arg1[%c5, %c0_34, %c0_35] : memref<8x8x32xf32, #tpu.memory_space<vmem>>, vector<1x8x32xf32>
    %44 = vector.shape_cast %43 : vector<1x8x32xf32> to vector<8x32xf32>
    %45 = arith.addf %42, %44 : vector<8x32xf32>
    %46 = math.tanh %45 : vector<8x32xf32>
    %c5_36 = arith.constant 5 : index
    %c0_37 = arith.constant 0 : index
    %c0_38 = arith.constant 0 : index
    %47 = vector.load %arg4[%c5_36, %c0_37, %c0_38] : memref<8x8x32xf32, #tpu.memory_space<vmem>>, vector<1x8x32xf32>
    %48 = vector.shape_cast %47 : vector<1x8x32xf32> to vector<8x32xf32>
    %49 = vector.shape_cast %46 : vector<8x32xf32> to vector<1x8x32xf32>
    tpu.vector_store %arg4[%c5_36, %c0_37, %c0_38], %49 {strides = array<i32>} : memref<8x8x32xf32, #tpu.memory_space<vmem>>, vector<1x8x32xf32>,
    %cst_39 = arith.constant dense<0.000000e+00> : vector<8x32xf32>
    %50 = tpu.matmul %46, %0, %cst_39 {dimension_numbers = #tpu.dot_dimension_numbers<[1], [0], [0], [1], [0, 0, 1, 1], [], []>} : vector<8x32xf32>, vector<32x32xf32>, vector<8x32xf32> -> vector<8x32xf32>
    %c6 = arith.constant 6 : index
    %c0_40 = arith.constant 0 : index
    %c0_41 = arith.constant 0 : index
    %51 = vector.load %arg1[%c6, %c0_40, %c0_41] : memref<8x8x32xf32, #tpu.memory_space<vmem>>, vector<1x8x32xf32>
    %52 = vector.shape_cast %51 : vector<1x8x32xf32> to vector<8x32xf32>
    %53 = arith.addf %50, %52 : vector<8x32xf32>
    %54 = math.tanh %53 : vector<8x32xf32>
    %c6_42 = arith.constant 6 : index
    %c0_43 = arith.constant 0 : index
    %c0_44 = arith.constant 0 : index
    %55 = vector.load %arg4[%c6_42, %c0_43, %c0_44] : memref<8x8x32xf32, #tpu.memory_space<vmem>>, vector<1x8x32xf32>
    %56 = vector.shape_cast %55 : vector<1x8x32xf32> to vector<8x32xf32>
    %57 = vector.shape_cast %54 : vector<8x32xf32> to vector<1x8x32xf32>
    tpu.vector_store %arg4[%c6_42, %c0_43, %c0_44], %57 {strides = array<i32>} : memref<8x8x32xf32, #tpu.memory_space<vmem>>, vector<1x8x32xf32>,
    %cst_45 = arith.constant dense<0.000000e+00> : vector<8x32xf32>
    %58 = tpu.matmul %54, %0, %cst_45 {dimension_numbers = #tpu.dot_dimension_numbers<[1], [0], [0], [1], [0, 0, 1, 1], [], []>} : vector<8x32xf32>, vector<32x32xf32>, vector<8x32xf32> -> vector<8x32xf32>
    %c7 = arith.constant 7 : index
    %c0_46 = arith.constant 0 : index
    %c0_47 = arith.constant 0 : index
    %59 = vector.load %arg1[%c7, %c0_46, %c0_47] : memref<8x8x32xf32, #tpu.memory_space<vmem>>, vector<1x8x32xf32>
    %60 = vector.shape_cast %59 : vector<1x8x32xf32> to vector<8x32xf32>
    %61 = arith.addf %58, %60 : vector<8x32xf32>
    %62 = math.tanh %61 : vector<8x32xf32>
    %c7_48 = arith.constant 7 : index
    %c0_49 = arith.constant 0 : index
    %c0_50 = arith.constant 0 : index
    %63 = vector.load %arg4[%c7_48, %c0_49, %c0_50] : memref<8x8x32xf32, #tpu.memory_space<vmem>>, vector<1x8x32xf32>
    %64 = vector.shape_cast %63 : vector<1x8x32xf32> to vector<8x32xf32>
    %65 = vector.shape_cast %62 : vector<8x32xf32> to vector<1x8x32xf32>
    tpu.vector_store %arg4[%c7_48, %c0_49, %c0_50], %65 {strides = array<i32>} : memref<8x8x32xf32, #tpu.memory_space<vmem>>, vector<1x8x32xf32>,
    return
  }
  func.func @transform_0(%arg0: i32) -> (i32, i32, i32) {
    %c0_i32 = arith.constant 0 : i32
    %c0_i32_0 = arith.constant 0 : i32
    %c0_i32_1 = arith.constant 0 : i32
    return %c0_i32, %arg0, %c0_i32_0 : i32, i32, i32
  }
  func.func @transform_1(%arg0: i32) -> (i32, i32) {
    %c0_i32 = arith.constant 0 : i32
    %c0_i32_0 = arith.constant 0 : i32
    return %arg0, %c0_i32 : i32, i32
  }
  func.func @transform_2(%arg0: i32) -> (i32, i32) {
    %c0_i32 = arith.constant 0 : i32
    %c0_i32_0 = arith.constant 0 : i32
    %c0_i32_1 = arith.constant 0 : i32
    return %c0_i32, %c0_i32_0 : i32, i32
  }
  func.func @transform_3(%arg0: i32) -> (i32, i32, i32) {
    %c0_i32 = arith.constant 0 : i32
    %c0_i32_0 = arith.constant 0 : i32
    %c0_i32_1 = arith.constant 0 : i32
    return %c0_i32, %arg0, %c0_i32_0 : i32, i32, i32
  }
}

</mosaic_0001>

<llo_original>
// kernel: rnn_forward.1
$region0: #{rnn_forward.1}
  #allocation0 [shape = 'u32[]', space=smem, size = 0x4, offset = 0x4, fixed_abs, tag = 'smem constant byte address 0x4 - core index']
  #allocation1 [shape = 'u32[144,128]{1,0:T(1,128)}', space=vmem, size = 0x12000, scoped, tag = 'internal scratch']
  %s0 = inlined_call_operand.vmem [shape: f32[8,8,32], index: 0, kind: input, shape index: {}]
  %s1 = inlined_call_operand.vmem [shape: f32[8,32], index: 1, kind: input, shape index: {}]
  %s2 = inlined_call_operand.vmem [shape: f32[32,32], index: 2, kind: input, shape index: {}]
  %s3 = inlined_call_operand.vmem [shape: f32[8,8,32], index: 3, kind: output, shape index: {}]
  %s4 = sld [smem:[#allocation0]]
  $region22: #{rnn_forward.1} parent=0
    _
  %s6 = ssub.s32 1, %s4
  %s7 = scalar_select 0, %s6, %s4
  // Predicated region
  $region2: #{rnn_forward.1} parent=0 // pred_check
    _
  $region3: #{rnn_forward.1} parent=0 // pred_check_branch
    %9 = sbr.rel (0) target = $region5
  $region4: #{rnn_forward.1} parent=0 // pred_region
    _
  $region5: #{rnn_forward.1} parent=0 // pred_fallthru
    _
  // Predicated region
  $region6: #{rnn_forward.1} parent=0 // pred_check
    _
  $region7: #{rnn_forward.1} parent=0 // pred_check_branch
    %11 = sbr.rel (0) target = $region9
  $region8: #{rnn_forward.1} parent=0 // pred_region
    _
  $region9: #{rnn_forward.1} parent=0 // pred_fallthru
    _
  // Predicated region
  $region10: #{rnn_forward.1} parent=0 // pred_check
    _
  $region11: #{rnn_forward.1} parent=0 // pred_check_branch
    %13 = sbr.rel (0) target = $region13
  $region12: #{rnn_forward.1} parent=0 // pred_region
    _
  $region13: #{rnn_forward.1} parent=0 // pred_fallthru
    _
  %v14 = vld [vmem:[%s2] sm:$0xff]
  %v15 = vld [vmem:[%s2 + $0x8] sm:$0xff]
  %v16 = vld [vmem:[%s2 + $0x10] sm:$0xff]
  %v17 = vld [vmem:[%s2 + $0x18] sm:$0xff]
  %v18 = vld [vmem:[%s1] sm:$0xff]
  %v19 = vld [vmem:[%s0] sm:$0xff]
  %vm20 = vcmask 261120
  %v22 = vsel %vm20, %v18, 0
  %24 = vmatprep.subr.mxu0 0.0
  %25 = vmatpush1.msra.mxu0 %v14
  %26 = vmatprep.subr.mxu0 0.0
  %27 = vmatpush1.msra.mxu0 %v15
  %28 = vmatprep.subr.mxu0 0.0
  %29 = vmatpush1.msra.mxu0 %v16
  %30 = vmatprep.subr.mxu0 0.0
  %31 = vmatpush1.msra.mxu0 %v17
  %32 = vmatprep.subr.mxu0 0.0
  %33 = vmatpush1.msra.mxu0 0.0
  %34 = vmatprep.subr.mxu0 0.0
  %35 = vmatpush1.msra.mxu0 0.0
  %36 = vmatprep.subr.mxu0 0.0
  %37 = vmatpush1.msra.mxu0 0.0
  %38 = vmatprep.subr.mxu0 0.0
  %39 = vmatpush1.msra.mxu0 0.0
  %40 = vmatprep.subr.mxu0 0.0
  %41 = vmatpush1.msra.mxu0 0.0
  %42 = vmatprep.subr.mxu0 0.0
  %43 = vmatpush1.msra.mxu0 0.0
  %44 = vmatprep.subr.mxu0 0.0
  %45 = vmatpush1.msra.mxu0 0.0
  %46 = vmatprep.subr.mxu0 0.0
  %47 = vmatpush1.msra.mxu0 0.0
  %48 = vmatprep.subr.mxu0 0.0
  %49 = vmatpush1.msra.mxu0 0.0
  %50 = vmatprep.subr.mxu0 0.0
  %51 = vmatpush1.msra.mxu0 0.0
  %52 = vmatprep.subr.mxu0 0.0
  %53 = vmatpush1.msra.mxu0 0.0
  %54 = vmatprep.subr.mxu0 0.0
  %55 = vmatpush1.msra.mxu0 0.0
  %56 = vmatprep.subr.mxu0 0.0
  %57 = vmatpush1.msra.mxu0 0.0
  %58 = vmatprep.subr.mxu0 0.0
  %59 = vmatpush1.msra.mxu0 0.0
  %60 = vmatprep.subr.mxu0 0.0
  %61 = vmatpush1.msra.mxu0 0.0
  %62 = vmatprep.subr.mxu0 0.0
  %63 = vmatpush1.msra.mxu0 0.0
  %64 = vmatprep.subr.mxu0 0.0
  %65 = vmatpush1.msra.mxu0 0.0
  %66 = vmatprep.subr.mxu0 0.0
  %67 = vmatpush1.msra.mxu0 0.0
  %68 = vmatprep.subr.mxu0 0.0
  %69 = vmatpush1.msra.mxu0 0.0
  %70 = vmatprep.subr.mxu0 0.0
  %71 = vmatpush1.msra.mxu0 0.0
  %72 = vmatprep.subr.mxu0 0.0
  %73 = vmatpush1.msra.mxu0 0.0
  %74 = vmatprep.subr.mxu0 0.0
  %75 = vmatpush1.msra.mxu0 0.0
  %76 = vmatprep.subr.mxu0 0.0
  %77 = vmatpush1.msra.mxu0 0.0
  %78 = vmatprep.subr.mxu0 0.0
  %79 = vmatpush1.msra.mxu0 0.0
  %80 = vmatprep.subr.mxu0 0.0
  %81 = vmatpush1.msra.mxu0 0.0
  %82 = vmatprep.subr.mxu0 0.0
  %83 = vmatpush1.msra.mxu0 0.0
  %84 = vmatprep.subr.mxu0 0.0
  %85 = vmatpush1.msra.mxu0 0.0
  %86 = vmatprep.subr.mxu0 0.0
  %87 = vmatpush1.msra.mxu0 0.0
  %88 = vmatprep.mubr.f32.mxu0 0.0
  %89 = vmatmul.mubr.f32.gmra.mrb[0].mxu0 %v22
  %v90 = vpop.f32.mrb[0].mxu0
  %v91 = vadd.f32 %v19, %v90
  %v92 = vpop.f32.mrb[0].mxu0
  %93 = vdwg.mxu0
  %v94 = vtanh.pop %v91
  %95 = vst.msk [vmem:[%s3] sm:$0xff] %vm20, %v94
  %s96 = scalar_lea.vmem %s0, 8
  %v97 = vld [vmem:[%s96] sm:$0xff]
  %v99 = vsel %vm20, %v94, 0
  %101 = vmatprep.subr.mxu0 0.0
  %102 = vmatpush1.msra.mxu0 %v14
  %103 = vmatprep.subr.mxu0 0.0
  %104 = vmatpush1.msra.mxu0 %v15
  %105 = vmatprep.subr.mxu0 0.0
  %106 = vmatpush1.msra.mxu0 %v16
  %107 = vmatprep.subr.mxu0 0.0
  %108 = vmatpush1.msra.mxu0 %v17
  %109 = vmatprep.subr.mxu0 0.0
  %110 = vmatpush1.msra.mxu0 0.0
  %111 = vmatprep.subr.mxu0 0.0
  %112 = vmatpush1.msra.mxu0 0.0
  %113 = vmatprep.subr.mxu0 0.0
  %114 = vmatpush1.msra.mxu0 0.0
  %115 = vmatprep.subr.mxu0 0.0
  %116 = vmatpush1.msra.mxu0 0.0
  %117 = vmatprep.subr.mxu0 0.0
  %118 = vmatpush1.msra.mxu0 0.0
  %119 = vmatprep.subr.mxu0 0.0
  %120 = vmatpush1.msra.mxu0 0.0
  %121 = vmatprep.subr.mxu0 0.0
  %122 = vmatpush1.msra.mxu0 0.0
  %123 = vmatprep.subr.mxu0 0.0
  %124 = vmatpush1.msra.mxu0 0.0
  %125 = vmatprep.subr.mxu0 0.0
  %126 = vmatpush1.msra.mxu0 0.0
  %127 = vmatprep.subr.mxu0 0.0
  %128 = vmatpush1.msra.mxu0 0.0
  %129 = vmatprep.subr.mxu0 0.0
  %130 = vmatpush1.msra.mxu0 0.0
  %131 = vmatprep.subr.mxu0 0.0
  %132 = vmatpush1.msra.mxu0 0.0
  %133 = vmatprep.subr.mxu0 0.0
  %134 = vmatpush1.msra.mxu0 0.0
  %135 = vmatprep.subr.mxu0 0.0
  %136 = vmatpush1.msra.mxu0 0.0
  %137 = vmatprep.subr.mxu0 0.0
  %138 = vmatpush1.msra.mxu0 0.0
  %139 = vmatprep.subr.mxu0 0.0
  %140 = vmatpush1.msra.mxu0 0.0
  %141 = vmatprep.subr.mxu0 0.0
  %142 = vmatpush1.msra.mxu0 0.0
  %143 = vmatprep.subr.mxu0 0.0
  %144 = vmatpush1.msra.mxu0 0.0
  %145 = vmatprep.subr.mxu0 0.0
  %146 = vmatpush1.msra.mxu0 0.0
  %147 = vmatprep.subr.mxu0 0.0
  %148 = vmatpush1.msra.mxu0 0.0
  %149 = vmatprep.subr.mxu0 0.0
  %150 = vmatpush1.msra.mxu0 0.0
  %151 = vmatprep.subr.mxu0 0.0
  %152 = vmatpush1.msra.mxu0 0.0
  %153 = vmatprep.subr.mxu0 0.0
  %154 = vmatpush1.msra.mxu0 0.0
  %155 = vmatprep.subr.mxu0 0.0
  %156 = vmatpush1.msra.mxu0 0.0
  %157 = vmatprep.subr.mxu0 0.0
  %158 = vmatpush1.msra.mxu0 0.0
  %159 = vmatprep.subr.mxu0 0.0
  %160 = vmatpush1.msra.mxu0 0.0
  %161 = vmatprep.subr.mxu0 0.0
  %162 = vmatpush1.msra.mxu0 0.0
  %163 = vmatprep.subr.mxu0 0.0
  %164 = vmatpush1.msra.mxu0 0.0
  %165 = vmatprep.mubr.f32.mxu0 0.0
  %166 = vmatmul.mubr.f32.gmra.mrb[0].mxu0 %v99
  %v167 = vpop.f32.mrb[0].mxu0
  %v168 = vadd.f32 %v97, %v167
  %v169 = vpop.f32.mrb[0].mxu0
  %170 = vdwg.mxu0
  %v171 = vtanh.pop %v168
  %s172 = scalar_lea.vmem %s3, 8
  %173 = vst.msk [vmem:[%s172] sm:$0xff] %vm20, %v171
  %s174 = scalar_lea.vmem %s0, 16
  %v175 = vld [vmem:[%s174] sm:$0xff]
  %v177 = vsel %vm20, %v171, 0
  %179 = vmatprep.subr.mxu0 0.0
  %180 = vmatpush1.msra.mxu0 %v14
  %181 = vmatprep.subr.mxu0 0.0
  %182 = vmatpush1.msra.mxu0 %v15
  %183 = vmatprep.subr.mxu0 0.0
  %184 = vmatpush1.msra.mxu0 %v16
  %185 = vmatprep.subr.mxu0 0.0
  %186 = vmatpush1.msra.mxu0 %v17
  %187 = vmatprep.subr.mxu0 0.0
  %188 = vmatpush1.msra.mxu0 0.0
  %189 = vmatprep.subr.mxu0 0.0
  %190 = vmatpush1.msra.mxu0 0.0
  %191 = vmatprep.subr.mxu0 0.0
  %192 = vmatpush1.msra.mxu0 0.0
  %193 = vmatprep.subr.mxu0 0.0
  %194 = vmatpush1.msra.mxu0 0.0
  %195 = vmatprep.subr.mxu0 0.0
  %196 = vmatpush1.msra.mxu0 0.0
  %197 = vmatprep.subr.mxu0 0.0
  %198 = vmatpush1.msra.mxu0 0.0
  %199 = vmatprep.subr.mxu0 0.0
  %200 = vmatpush1.msra.mxu0 0.0
  %201 = vmatprep.subr.mxu0 0.0
  %202 = vmatpush1.msra.mxu0 0.0
  %203 = vmatprep.subr.mxu0 0.0
  %204 = vmatpush1.msra.mxu0 0.0
  %205 = vmatprep.subr.mxu0 0.0
  %206 = vmatpush1.msra.mxu0 0.0
  %207 = vmatprep.subr.mxu0 0.0
  %208 = vmatpush1.msra.mxu0 0.0
  %209 = vmatprep.subr.mxu0 0.0
  %210 = vmatpush1.msra.mxu0 0.0
  %211 = vmatprep.subr.mxu0 0.0
  %212 = vmatpush1.msra.mxu0 0.0
  %213 = vmatprep.subr.mxu0 0.0
  %214 = vmatpush1.msra.mxu0 0.0
  %215 = vmatprep.subr.mxu0 0.0
  %216 = vmatpush1.msra.mxu0 0.0
  %217 = vmatprep.subr.mxu0 0.0
  %218 = vmatpush1.msra.mxu0 0.0
  %219 = vmatprep.subr.mxu0 0.0
  %220 = vmatpush1.msra.mxu0 0.0
  %221 = vmatprep.subr.mxu0 0.0
  %222 = vmatpush1.msra.mxu0 0.0
  %223 = vmatprep.subr.mxu0 0.0
  %224 = vmatpush1.msra.mxu0 0.0
  %225 = vmatprep.subr.mxu0 0.0
  %226 = vmatpush1.msra.mxu0 0.0
  %227 = vmatprep.subr.mxu0 0.0
  %228 = vmatpush1.msra.mxu0 0.0
  %229 = vmatprep.subr.mxu0 0.0
  %230 = vmatpush1.msra.mxu0 0.0
  %231 = vmatprep.subr.mxu0 0.0
  %232 = vmatpush1.msra.mxu0 0.0
  %233 = vmatprep.subr.mxu0 0.0
  %234 = vmatpush1.msra.mxu0 0.0
  %235 = vmatprep.subr.mxu0 0.0
  %236 = vmatpush1.msra.mxu0 0.0
  %237 = vmatprep.subr.mxu0 0.0
  %238 = vmatpush1.msra.mxu0 0.0
  %239 = vmatprep.subr.mxu0 0.0
  %240 = vmatpush1.msra.mxu0 0.0
  %241 = vmatprep.subr.mxu0 0.0
  %242 = vmatpush1.msra.mxu0 0.0
  %243 = vmatprep.mubr.f32.mxu0 0.0
  %244 = vmatmul.mubr.f32.gmra.mrb[0].mxu0 %v177
  %v245 = vpop.f32.mrb[0].mxu0
  %v246 = vadd.f32 %v175, %v245
  %v247 = vpop.f32.mrb[0].mxu0
  %248 = vdwg.mxu0
  %v249 = vtanh.pop %v246
  %s250 = scalar_lea.vmem %s3, 16
  %251 = vst.msk [vmem:[%s250] sm:$0xff] %vm20, %v249
  %s252 = scalar_lea.vmem %s0, 24
  %v253 = vld [vmem:[%s252] sm:$0xff]
  %v255 = vsel %vm20, %v249, 0
  %257 = vmatprep.subr.mxu0 0.0
  %258 = vmatpush1.msra.mxu0 %v14
  %259 = vmatprep.subr.mxu0 0.0
  %260 = vmatpush1.msra.mxu0 %v15
  %261 = vmatprep.subr.mxu0 0.0
  %262 = vmatpush1.msra.mxu0 %v16
  %263 = vmatprep.subr.mxu0 0.0
  %264 = vmatpush1.msra.mxu0 %v17
  %265 = vmatprep.subr.mxu0 0.0
  %266 = vmatpush1.msra.mxu0 0.0
  %267 = vmatprep.subr.mxu0 0.0
  %268 = vmatpush1.msra.mxu0 0.0
  %269 = vmatprep.subr.mxu0 0.0
  %270 = vmatpush1.msra.mxu0 0.0
  %271 = vmatprep.subr.mxu0 0.0
  %272 = vmatpush1.msra.mxu0 0.0
  %273 = vmatprep.subr.mxu0 0.0
  %274 = vmatpush1.msra.mxu0 0.0
  %275 = vmatprep.subr.mxu0 0.0
  %276 = vmatpush1.msra.mxu0 0.0
  %277 = vmatprep.subr.mxu0 0.0
  %278 = vmatpush1.msra.mxu0 0.0
  %279 = vmatprep.subr.mxu0 0.0
  %280 = vmatpush1.msra.mxu0 0.0
  %281 = vmatprep.subr.mxu0 0.0
  %282 = vmatpush1.msra.mxu0 0.0
  %283 = vmatprep.subr.mxu0 0.0
  %284 = vmatpush1.msra.mxu0 0.0
  %285 = vmatprep.subr.mxu0 0.0
  %286 = vmatpush1.msra.mxu0 0.0
  %287 = vmatprep.subr.mxu0 0.0
  %288 = vmatpush1.msra.mxu0 0.0
  %289 = vmatprep.subr.mxu0 0.0
  %290 = vmatpush1.msra.mxu0 0.0
  %291 = vmatprep.subr.mxu0 0.0
  %292 = vmatpush1.msra.mxu0 0.0
  %293 = vmatprep.subr.mxu0 0.0
  %294 = vmatpush1.msra.mxu0 0.0
  %295 = vmatprep.subr.mxu0 0.0
  %296 = vmatpush1.msra.mxu0 0.0
  %297 = vmatprep.subr.mxu0 0.0
  %298 = vmatpush1.msra.mxu0 0.0
  %299 = vmatprep.subr.mxu0 0.0
  %300 = vmatpush1.msra.mxu0 0.0
  %301 = vmatprep.subr.mxu0 0.0
  %302 = vmatpush1.msra.mxu0 0.0
  %303 = vmatprep.subr.mxu0 0.0
  %304 = vmatpush1.msra.mxu0 0.0
  %305 = vmatprep.subr.mxu0 0.0
  %306 = vmatpush1.msra.mxu0 0.0
  %307 = vmatprep.subr.mxu0 0.0
  %308 = vmatpush1.msra.mxu0 0.0
  %309 = vmatprep.subr.mxu0 0.0
  %310 = vmatpush1.msra.mxu0 0.0
  %311 = vmatprep.subr.mxu0 0.0
  %312 = vmatpush1.msra.mxu0 0.0
  %313 = vmatprep.subr.mxu0 0.0
  %314 = vmatpush1.msra.mxu0 0.0
  %315 = vmatprep.subr.mxu0 0.0
  %316 = vmatpush1.msra.mxu0 0.0
  %317 = vmatprep.subr.mxu0 0.0
  %318 = vmatpush1.msra.mxu0 0.0
  %319 = vmatprep.subr.mxu0 0.0
  %320 = vmatpush1.msra.mxu0 0.0
  %321 = vmatprep.mubr.f32.mxu0 0.0
  %322 = vmatmul.mubr.f32.gmra.mrb[0].mxu0 %v255
  %v323 = vpop.f32.mrb[0].mxu0
  %v324 = vadd.f32 %v253, %v323
  %v325 = vpop.f32.mrb[0].mxu0
  %326 = vdwg.mxu0
  %v327 = vtanh.pop %v324
  %s328 = scalar_lea.vmem %s3, 24
  %329 = vst.msk [vmem:[%s328] sm:$0xff] %vm20, %v327
  %s330 = scalar_lea.vmem %s0, 32
  %v331 = vld [vmem:[%s330] sm:$0xff]
  %v333 = vsel %vm20, %v327, 0
  %335 = vmatprep.subr.mxu0 0.0
  %336 = vmatpush1.msra.mxu0 %v14
  %337 = vmatprep.subr.mxu0 0.0
  %338 = vmatpush1.msra.mxu0 %v15
  %339 = vmatprep.subr.mxu0 0.0
  %340 = vmatpush1.msra.mxu0 %v16
  %341 = vmatprep.subr.mxu0 0.0
  %342 = vmatpush1.msra.mxu0 %v17
  %343 = vmatprep.subr.mxu0 0.0
  %344 = vmatpush1.msra.mxu0 0.0
  %345 = vmatprep.subr.mxu0 0.0
  %346 = vmatpush1.msra.mxu0 0.0
  %347 = vmatprep.subr.mxu0 0.0
  %348 = vmatpush1.msra.mxu0 0.0
  %349 = vmatprep.subr.mxu0 0.0
  %350 = vmatpush1.msra.mxu0 0.0
  %351 = vmatprep.subr.mxu0 0.0
  %352 = vmatpush1.msra.mxu0 0.0
  %353 = vmatprep.subr.mxu0 0.0
  %354 = vmatpush1.msra.mxu0 0.0
  %355 = vmatprep.subr.mxu0 0.0
  %356 = vmatpush1.msra.mxu0 0.0
  %357 = vmatprep.subr.mxu0 0.0
  %358 = vmatpush1.msra.mxu0 0.0
  %359 = vmatprep.subr.mxu0 0.0
  %360 = vmatpush1.msra.mxu0 0.0
  %361 = vmatprep.subr.mxu0 0.0
  %362 = vmatpush1.msra.mxu0 0.0
  %363 = vmatprep.subr.mxu0 0.0
  %364 = vmatpush1.msra.mxu0 0.0
  %365 = vmatprep.subr.mxu0 0.0
  %366 = vmatpush1.msra.mxu0 0.0
  %367 = vmatprep.subr.mxu0 0.0
  %368 = vmatpush1.msra.mxu0 0.0
  %369 = vmatprep.subr.mxu0 0.0
  %370 = vmatpush1.msra.mxu0 0.0
  %371 = vmatprep.subr.mxu0 0.0
  %372 = vmatpush1.msra.mxu0 0.0
  %373 = vmatprep.subr.mxu0 0.0
  %374 = vmatpush1.msra.mxu0 0.0
  %375 = vmatprep.subr.mxu0 0.0
  %376 = vmatpush1.msra.mxu0 0.0
  %377 = vmatprep.subr.mxu0 0.0
  %378 = vmatpush1.msra.mxu0 0.0
  %379 = vmatprep.subr.mxu0 0.0
  %380 = vmatpush1.msra.mxu0 0.0
  %381 = vmatprep.subr.mxu0 0.0
  %382 = vmatpush1.msra.mxu0 0.0
  %383 = vmatprep.subr.mxu0 0.0
  %384 = vmatpush1.msra.mxu0 0.0
  %385 = vmatprep.subr.mxu0 0.0
  %386 = vmatpush1.msra.mxu0 0.0
  %387 = vmatprep.subr.mxu0 0.0
  %388 = vmatpush1.msra.mxu0 0.0
  %389 = vmatprep.subr.mxu0 0.0
  %390 = vmatpush1.msra.mxu0 0.0
  %391 = vmatprep.subr.mxu0 0.0
  %392 = vmatpush1.msra.mxu0 0.0
  %393 = vmatprep.subr.mxu0 0.0
  %394 = vmatpush1.msra.mxu0 0.0
  %395 = vmatprep.subr.mxu0 0.0
  %396 = vmatpush1.msra.mxu0 0.0
  %397 = vmatprep.subr.mxu0 0.0
  %398 = vmatpush1.msra.mxu0 0.0
  %399 = vmatprep.mubr.f32.mxu0 0.0
  %400 = vmatmul.mubr.f32.gmra.mrb[0].mxu0 %v333
  %v401 = vpop.f32.mrb[0].mxu0
  %v402 = vadd.f32 %v331, %v401
  %v403 = vpop.f32.mrb[0].mxu0
  %404 = vdwg.mxu0
  %v405 = vtanh.pop %v402
  %s406 = scalar_lea.vmem %s3, 32
  %407 = vst.msk [vmem:[%s406] sm:$0xff] %vm20, %v405
  %s408 = scalar_lea.vmem %s0, 40
  %v409 = vld [vmem:[%s408] sm:$0xff]
  %v411 = vsel %vm20, %v405, 0
  %413 = vmatprep.subr.mxu0 0.0
  %414 = vmatpush1.msra.mxu0 %v14
  %415 = vmatprep.subr.mxu0 0.0
  %416 = vmatpush1.msra.mxu0 %v15
  %417 = vmatprep.subr.mxu0 0.0
  %418 = vmatpush1.msra.mxu0 %v16
  %419 = vmatprep.subr.mxu0 0.0
  %420 = vmatpush1.msra.mxu0 %v17
  %421 = vmatprep.subr.mxu0 0.0
  %422 = vmatpush1.msra.mxu0 0.0
  %423 = vmatprep.subr.mxu0 0.0
  %424 = vmatpush1.msra.mxu0 0.0
  %425 = vmatprep.subr.mxu0 0.0
  %426 = vmatpush1.msra.mxu0 0.0
  %427 = vmatprep.subr.mxu0 0.0
  %428 = vmatpush1.msra.mxu0 0.0
  %429 = vmatprep.subr.mxu0 0.0
  %430 = vmatpush1.msra.mxu0 0.0
  %431 = vmatprep.subr.mxu0 0.0
  %432 = vmatpush1.msra.mxu0 0.0
  %433 = vmatprep.subr.mxu0 0.0
  %434 = vmatpush1.msra.mxu0 0.0
  %435 = vmatprep.subr.mxu0 0.0
  %436 = vmatpush1.msra.mxu0 0.0
  %437 = vmatprep.subr.mxu0 0.0
  %438 = vmatpush1.msra.mxu0 0.0
  %439 = vmatprep.subr.mxu0 0.0
  %440 = vmatpush1.msra.mxu0 0.0
  %441 = vmatprep.subr.mxu0 0.0
  %442 = vmatpush1.msra.mxu0 0.0
  %443 = vmatprep.subr.mxu0 0.0
  %444 = vmatpush1.msra.mxu0 0.0
  %445 = vmatprep.subr.mxu0 0.0
  %446 = vmatpush1.msra.mxu0 0.0
  %447 = vmatprep.subr.mxu0 0.0
  %448 = vmatpush1.msra.mxu0 0.0
  %449 = vmatprep.subr.mxu0 0.0
  %450 = vmatpush1.msra.mxu0 0.0
  %451 = vmatprep.subr.mxu0 0.0
  %452 = vmatpush1.msra.mxu0 0.0
  %453 = vmatprep.subr.mxu0 0.0
  %454 = vmatpush1.msra.mxu0 0.0
  %455 = vmatprep.subr.mxu0 0.0
  %456 = vmatpush1.msra.mxu0 0.0
  %457 = vmatprep.subr.mxu0 0.0
  %458 = vmatpush1.msra.mxu0 0.0
  %459 = vmatprep.subr.mxu0 0.0
  %460 = vmatpush1.msra.mxu0 0.0
  %461 = vmatprep.subr.mxu0 0.0
  %462 = vmatpush1.msra.mxu0 0.0
  %463 = vmatprep.subr.mxu0 0.0
  %464 = vmatpush1.msra.mxu0 0.0
  %465 = vmatprep.subr.mxu0 0.0
  %466 = vmatpush1.msra.mxu0 0.0
  %467 = vmatprep.subr.mxu0 0.0
  %468 = vmatpush1.msra.mxu0 0.0
  %469 = vmatprep.subr.mxu0 0.0
  %470 = vmatpush1.msra.mxu0 0.0
  %471 = vmatprep.subr.mxu0 0.0
  %472 = vmatpush1.msra.mxu0 0.0
  %473 = vmatprep.subr.mxu0 0.0
  %474 = vmatpush1.msra.mxu0 0.0
  %475 = vmatprep.subr.mxu0 0.0
  %476 = vmatpush1.msra.mxu0 0.0
  %477 = vmatprep.mubr.f32.mxu0 0.0
  %478 = vmatmul.mubr.f32.gmra.mrb[0].mxu0 %v411
  %v479 = vpop.f32.mrb[0].mxu0
  %v480 = vadd.f32 %v409, %v479
  %v481 = vpop.f32.mrb[0].mxu0
  %482 = vdwg.mxu0
  %v483 = vtanh.pop %v480
  %s484 = scalar_lea.vmem %s3, 40
  %485 = vst.msk [vmem:[%s484] sm:$0xff] %vm20, %v483
  %s486 = scalar_lea.vmem %s0, 48
  %v487 = vld [vmem:[%s486] sm:$0xff]
  %v489 = vsel %vm20, %v483, 0
  %491 = vmatprep.subr.mxu0 0.0
  %492 = vmatpush1.msra.mxu0 %v14
  %493 = vmatprep.subr.mxu0 0.0
  %494 = vmatpush1.msra.mxu0 %v15
  %495 = vmatprep.subr.mxu0 0.0
  %496 = vmatpush1.msra.mxu0 %v16
  %497 = vmatprep.subr.mxu0 0.0
  %498 = vmatpush1.msra.mxu0 %v17
  %499 = vmatprep.subr.mxu0 0.0
  %500 = vmatpush1.msra.mxu0 0.0
  %501 = vmatprep.subr.mxu0 0.0
  %502 = vmatpush1.msra.mxu0 0.0
  %503 = vmatprep.subr.mxu0 0.0
  %504 = vmatpush1.msra.mxu0 0.0
  %505 = vmatprep.subr.mxu0 0.0
  %506 = vmatpush1.msra.mxu0 0.0
  %507 = vmatprep.subr.mxu0 0.0
  %508 = vmatpush1.msra.mxu0 0.0
  %509 = vmatprep.subr.mxu0 0.0
  %510 = vmatpush1.msra.mxu0 0.0
  %511 = vmatprep.subr.mxu0 0.0
  %512 = vmatpush1.msra.mxu0 0.0
  %513 = vmatprep.subr.mxu0 0.0
  %514 = vmatpush1.msra.mxu0 0.0
  %515 = vmatprep.subr.mxu0 0.0
  %516 = vmatpush1.msra.mxu0 0.0
  %517 = vmatprep.subr.mxu0 0.0
  %518 = vmatpush1.msra.mxu0 0.0
  %519 = vmatprep.subr.mxu0 0.0
  %520 = vmatpush1.msra.mxu0 0.0
  %521 = vmatprep.subr.mxu0 0.0
  %522 = vmatpush1.msra.mxu0 0.0
  %523 = vmatprep.subr.mxu0 0.0
  %524 = vmatpush1.msra.mxu0 0.0
  %525 = vmatprep.subr.mxu0 0.0
  %526 = vmatpush1.msra.mxu0 0.0
  %527 = vmatprep.subr.mxu0 0.0
  %528 = vmatpush1.msra.mxu0 0.0
  %529 = vmatprep.subr.mxu0 0.0
  %530 = vmatpush1.msra.mxu0 0.0
  %531 = vmatprep.subr.mxu0 0.0
  %532 = vmatpush1.msra.mxu0 0.0
  %533 = vmatprep.subr.mxu0 0.0
  %534 = vmatpush1.msra.mxu0 0.0
  %535 = vmatprep.subr.mxu0 0.0
  %536 = vmatpush1.msra.mxu0 0.0
  %537 = vmatprep.subr.mxu0 0.0
  %538 = vmatpush1.msra.mxu0 0.0
  %539 = vmatprep.subr.mxu0 0.0
  %540 = vmatpush1.msra.mxu0 0.0
  %541 = vmatprep.subr.mxu0 0.0
  %542 = vmatpush1.msra.mxu0 0.0
  %543 = vmatprep.subr.mxu0 0.0
  %544 = vmatpush1.msra.mxu0 0.0
  %545 = vmatprep.subr.mxu0 0.0
  %546 = vmatpush1.msra.mxu0 0.0
  %547 = vmatprep.subr.mxu0 0.0
  %548 = vmatpush1.msra.mxu0 0.0
  %549 = vmatprep.subr.mxu0 0.0
  %550 = vmatpush1.msra.mxu0 0.0
  %551 = vmatprep.subr.mxu0 0.0
  %552 = vmatpush1.msra.mxu0 0.0
  %553 = vmatprep.subr.mxu0 0.0
  %554 = vmatpush1.msra.mxu0 0.0
  %555 = vmatprep.mubr.f32.mxu0 0.0
  %556 = vmatmul.mubr.f32.gmra.mrb[0].mxu0 %v489
  %v557 = vpop.f32.mrb[0].mxu0
  %v558 = vadd.f32 %v487, %v557
  %v559 = vpop.f32.mrb[0].mxu0
  %560 = vdwg.mxu0
  %v561 = vtanh.pop %v558
  %s562 = scalar_lea.vmem %s3, 48
  %563 = vst.msk [vmem:[%s562] sm:$0xff] %vm20, %v561
  %s564 = scalar_lea.vmem %s0, 56
  %v565 = vld [vmem:[%s564] sm:$0xff]
  %v567 = vsel %vm20, %v561, 0
  %569 = vmatprep.subr.mxu0 0.0
  %570 = vmatpush1.msra.mxu0 %v14
  %571 = vmatprep.subr.mxu0 0.0
  %572 = vmatpush1.msra.mxu0 %v15
  %573 = vmatprep.subr.mxu0 0.0
  %574 = vmatpush1.msra.mxu0 %v16
  %575 = vmatprep.subr.mxu0 0.0
  %576 = vmatpush1.msra.mxu0 %v17
  %577 = vmatprep.subr.mxu0 0.0
  %578 = vmatpush1.msra.mxu0 0.0
  %579 = vmatprep.subr.mxu0 0.0
  %580 = vmatpush1.msra.mxu0 0.0
  %581 = vmatprep.subr.mxu0 0.0
  %582 = vmatpush1.msra.mxu0 0.0
  %583 = vmatprep.subr.mxu0 0.0
  %584 = vmatpush1.msra.mxu0 0.0
  %585 = vmatprep.subr.mxu0 0.0
  %586 = vmatpush1.msra.mxu0 0.0
  %587 = vmatprep.subr.mxu0 0.0
  %588 = vmatpush1.msra.mxu0 0.0
  %589 = vmatprep.subr.mxu0 0.0
  %590 = vmatpush1.msra.mxu0 0.0
  %591 = vmatprep.subr.mxu0 0.0
  %592 = vmatpush1.msra.mxu0 0.0
  %593 = vmatprep.subr.mxu0 0.0
  %594 = vmatpush1.msra.mxu0 0.0
  %595 = vmatprep.subr.mxu0 0.0
  %596 = vmatpush1.msra.mxu0 0.0
  %597 = vmatprep.subr.mxu0 0.0
  %598 = vmatpush1.msra.mxu0 0.0
  %599 = vmatprep.subr.mxu0 0.0
  %600 = vmatpush1.msra.mxu0 0.0
  %601 = vmatprep.subr.mxu0 0.0
  %602 = vmatpush1.msra.mxu0 0.0
  %603 = vmatprep.subr.mxu0 0.0
  %604 = vmatpush1.msra.mxu0 0.0
  %605 = vmatprep.subr.mxu0 0.0
  %606 = vmatpush1.msra.mxu0 0.0
  %607 = vmatprep.subr.mxu0 0.0
  %608 = vmatpush1.msra.mxu0 0.0
  %609 = vmatprep.subr.mxu0 0.0
  %610 = vmatpush1.msra.mxu0 0.0
  %611 = vmatprep.subr.mxu0 0.0
  %612 = vmatpush1.msra.mxu0 0.0
  %613 = vmatprep.subr.mxu0 0.0
  %614 = vmatpush1.msra.mxu0 0.0
  %615 = vmatprep.subr.mxu0 0.0
  %616 = vmatpush1.msra.mxu0 0.0
  %617 = vmatprep.subr.mxu0 0.0
  %618 = vmatpush1.msra.mxu0 0.0
  %619 = vmatprep.subr.mxu0 0.0
  %620 = vmatpush1.msra.mxu0 0.0
  %621 = vmatprep.subr.mxu0 0.0
  %622 = vmatpush1.msra.mxu0 0.0
  %623 = vmatprep.subr.mxu0 0.0
  %624 = vmatpush1.msra.mxu0 0.0
  %625 = vmatprep.subr.mxu0 0.0
  %626 = vmatpush1.msra.mxu0 0.0
  %627 = vmatprep.subr.mxu0 0.0
  %628 = vmatpush1.msra.mxu0 0.0
  %629 = vmatprep.subr.mxu0 0.0
  %630 = vmatpush1.msra.mxu0 0.0
  %631 = vmatprep.subr.mxu0 0.0
  %632 = vmatpush1.msra.mxu0 0.0
  %633 = vmatprep.mubr.f32.mxu0 0.0
  %634 = vmatmul.mubr.f32.gmra.mrb[0].mxu0 %v567
  %v635 = vpop.f32.mrb[0].mxu0
  %v636 = vadd.f32 %v565, %v635
  %v637 = vpop.f32.mrb[0].mxu0
  %638 = vdwg.mxu0
  %v639 = vtanh.pop %v636
  %s640 = scalar_lea.vmem %s3, 56
  %641 = vst.msk [vmem:[%s640] sm:$0xff] %vm20, %v639
  // Predicated region
  $region14: #{rnn_forward.1} parent=0 // pred_check
    _
  $region15: #{rnn_forward.1} parent=0 // pred_check_branch
    %643 = sbr.rel (0) target = $region17
  $region16: #{rnn_forward.1} parent=0 // pred_region
    _
  $region17: #{rnn_forward.1} parent=0 // pred_fallthru
    _
  // Predicated region
  $region18: #{rnn_forward.1} parent=0 // pred_check
    _
  $region19: #{rnn_forward.1} parent=0 // pred_check_branch
    %645 = sbr.rel (0) target = $region21
  $region20: #{rnn_forward.1} parent=0 // pred_region
    _
  $region21: #{rnn_forward.1} parent=0 // pred_fallthru
    _

</llo_original>
